<compile_context>
chip_gen: v5e
topology: v5e:2x2
jax: 0.10.0
libtpu: 0.0.40
codegen_flags: <defaults>
</compile_context>

<pallas_src>
import functools

import jax
import jax.numpy as jnp
from jax.experimental import pallas as pl
from jax.experimental.pallas import tpu as pltpu


def _posterior_kernel(x_ref, w1_ref, b1_ref, w2_ref, b2_ref, w3_ref, b3_ref,
                      out_ref):
    x = x_ref[...]                                      # (2, Bt)   f32
    w1 = w1_ref[...]                                    # (64, 2)   f32

    # Layer 1: Linear(2 -> 64) + ReLU as VPU broadcast-FMAs
    # (K=2 is a degenerate contraction for the MXU).
    h1 = w1[:, 0:1] * x[0:1, :] + w1[:, 1:2] * x[1:2, :] + b1_ref[...]
    h1 = jnp.maximum(h1, 0.0)                           # (64, Bt)

    # Layer 2: Linear(64 -> 64) + ReLU on the MXU.
    h2 = jnp.dot(w2_ref[...], h1, preferred_element_type=jnp.float32)
    h2 = jnp.maximum(h2 + b2_ref[...], 0.0)             # (64, Bt)

    # Layer 3: Linear(64 -> 4).
    params = jnp.dot(w3_ref[...], h2, preferred_element_type=jnp.float32)
    params = params + b3_ref[...]                       # (4, Bt)

    # Fused lane-dense output: rows 0:2 = mean, rows 2:4 = exp(0.5 * log_var).
    row = jax.lax.broadcasted_iota(jnp.int32, params.shape, 0)
    out_ref[...] = jnp.where(row < 2, params, jnp.exp(0.5 * params))


def _round_up(n, m):
    return ((n + m - 1) // m) * m


@functools.partial(jax.jit, static_argnames=("block_b",))
def variational_posterior_forward(x, w1, b1, w2, b2, w3, b3, *, block_b=8192):
    """q_phi(z|x): returns (mean, std), each of shape (B, 2) float32.

    Weights are stored (in_features, out_features); biases as (1, out_features),
    matching PyTorch's x @ W.T + b semantics.
    """
    B = x.shape[0]
    h = w1.shape[1]          # 64 hidden units
    z2 = w3.shape[1]         # 4  (= 2 * latent_dim)

    # Batch tile: multiple of 128 lanes; large tiles amortize ~0.35us/step.
    b_tile = min(block_b, _round_up(B, 128))
    B_pad = _round_up(B, b_tile)
    grid = (B_pad // b_tile,)

    # Layout plumbing outside the kernel: batch on lanes, features on sublanes;
    # weights transposed to (out, in); biases to (out, 1).
    x_t = jnp.pad(x.T.astype(jnp.float32), ((0, 0), (0, B_pad - B)))
    w1_t = w1.T                               # (64, 2)
    b1_t = b1.reshape(h, 1)                   # (64, 1)
    w2_t = w2.T                               # (64, 64)
    b2_t = b2.reshape(h, 1)                   # (64, 1)
    w3_t = w3.T                               # (4, 64)
    b3_t = b3.reshape(z2, 1)                  # (4, 1)

    resident = lambda i: (0, 0)               # weights stay VMEM-resident
    out_t = pl.pallas_call(
        _posterior_kernel,
        out_shape=jax.ShapeDtypeStruct((z2, B_pad), jnp.float32),
        grid=grid,
        in_specs=[
            pl.BlockSpec((2, b_tile), lambda i: (0, i)),   # x tile
            pl.BlockSpec((h, 2), resident),                # w1^T
            pl.BlockSpec((h, 1), resident),                # b1
            pl.BlockSpec((h, h), resident),                # w2^T
            pl.BlockSpec((h, 1), resident),                # b2
            pl.BlockSpec((z2, h), resident),               # w3^T
            pl.BlockSpec((z2, 1), resident),               # b3
        ],
        out_specs=pl.BlockSpec((z2, b_tile), lambda i: (0, i)),
        compiler_params=pltpu.CompilerParams(
            dimension_semantics=("parallel",)),
    )(x_t, w1_t, b1_t, w2_t, b2_t, w3_t, b3_t)

    params = out_t[:, :B].T                   # (B, 4): un-pad + un-transpose
    return params[:, :2], params[:, 2:]       # (mean, std)


def init_params(key):
    """PyTorch Linear default init (U[-1/sqrt(fan_in), 1/sqrt(fan_in)]).
    Weights stored transposed: (in_features, out_features)."""
    ks = jax.random.split(key, 6)

    def uni(k, shape, fan_in):
        bound = 1.0 / jnp.sqrt(float(fan_in))
        return jax.random.uniform(k, shape, jnp.float32, minval=-bound, maxval=bound)

    w1 = uni(ks[0], (2, 64), 2)
    b1 = uni(ks[1], (1, 64), 2)
    w2 = uni(ks[2], (64, 64), 64)
    b2 = uni(ks[3], (1, 64), 64)
    w3 = uni(ks[4], (64, 4), 64)
    b3 = uni(ks[5], (1, 4), 64)
    return w1, b1, w2, b2, w3, b3


def _reference(x, w1, b1, w2, b2, w3, b3):
    h1 = jnp.maximum(x @ w1 + b1, 0.0)
    h2 = jnp.maximum(h1 @ w2 + b2, 0.0)
    params = h2 @ w3 + b3
    return params[:, :2], jnp.exp(0.5 * params[:, 2:])


# TODO(synk): VariationalPosterior.sample (reparameterization noise) is left to
# the caller; only forward() is implemented here.

if __name__ == "__main__":
    key = jax.random.PRNGKey(0)
    k_x, k_x2, k_p = jax.random.split(key, 3)
    w1, b1, w2, b2, w3, b3 = init_params(k_p)

    # Small batch (single tile, padded to 128 lanes).
    B = 8
    x = jax.random.normal(k_x, (B, 2), jnp.float32)
    mean, std = variational_posterior_forward(x, w1, b1, w2, b2, w3, b3)
    jax.block_until_ready((mean, std))
    mean_ref, std_ref = _reference(x, w1, b1, w2, b2, w3, b3)
    assert mean.shape == (B, 2) and std.shape == (B, 2)
    assert jnp.allclose(mean, mean_ref, atol=1e-5, rtol=1e-5)
    assert jnp.allclose(std, std_ref, atol=1e-5, rtol=1e-5)

    # Ragged batch exercising the multi-tile grid + padding path.
    B2 = 300
    x2 = jax.random.normal(k_x2, (B2, 2), jnp.float32)
    mean2, std2 = variational_posterior_forward(
        x2, w1, b1, w2, b2, w3, b3, block_b=128)
    jax.block_until_ready((mean2, std2))
    mean2_ref, std2_ref = _reference(x2, w1, b1, w2, b2, w3, b3)
    assert mean2.shape == (B2, 2) and std2.shape == (B2, 2)
    assert jnp.allclose(mean2, mean2_ref, atol=1e-5, rtol=1e-5)
    assert jnp.allclose(std2, std2_ref, atol=1e-5, rtol=1e-5)

    print("KERNEL_OK")
</pallas_src>

<mosaic_0001>
module attributes {stable_mosaic.version = 11 : i64} {
  func.func @_posterior_kernel(%arg0: i32, %arg1: memref<2x128xf32, #tpu.memory_space<vmem>>, %arg2: memref<64x2xf32, #tpu.memory_space<vmem>>, %arg3: memref<64x1xf32, #tpu.memory_space<vmem>>, %arg4: memref<64x64xf32, #tpu.memory_space<vmem>>, %arg5: memref<64x1xf32, #tpu.memory_space<vmem>>, %arg6: memref<4x64xf32, #tpu.memory_space<vmem>>, %arg7: memref<4x1xf32, #tpu.memory_space<vmem>>, %arg8: memref<4x128xf32, #tpu.memory_space<vmem>>) attributes {dimension_semantics = [#tpu.dimension_semantics<parallel>], iteration_bounds = array<i64: 1>, scalar_prefetch = 0 : i64, scratch_operands = 0 : i64, tpu.core_type = #tpu.core_type<tc>, window_params = [{transform_indices = @transform_0, window_bounds = array<i64: 2, 128>}, {pipeline_mode = #tpu.pipeline_mode<synchronous>, transform_indices = @transform_1, window_bounds = array<i64: 64, 2>}, {pipeline_mode = #tpu.pipeline_mode<synchronous>, transform_indices = @transform_2, window_bounds = array<i64: 64, 1>}, {pipeline_mode = #tpu.pipeline_mode<synchronous>, transform_indices = @transform_3, window_bounds = array<i64: 64, 64>}, {pipeline_mode = #tpu.pipeline_mode<synchronous>, transform_indices = @transform_4, window_bounds = array<i64: 64, 1>}, {pipeline_mode = #tpu.pipeline_mode<synchronous>, transform_indices = @transform_5, window_bounds = array<i64: 4, 64>}, {pipeline_mode = #tpu.pipeline_mode<synchronous>, transform_indices = @transform_6, window_bounds = array<i64: 4, 1>}, {transform_indices = @transform_7, window_bounds = array<i64: 4, 128>}]} {
    %c0 = arith.constant 0 : index
    %c0_0 = arith.constant 0 : index
    %0 = vector.load %arg1[%c0, %c0_0] : memref<2x128xf32, #tpu.memory_space<vmem>>, vector<2x128xf32>
    %c0_1 = arith.constant 0 : index
    %c0_2 = arith.constant 0 : index
    %1 = vector.load %arg2[%c0_1, %c0_2] : memref<64x2xf32, #tpu.memory_space<vmem>>, vector<64x2xf32>
    %2 = vector.extract_strided_slice %1 {offsets = [0, 0], sizes = [64, 1], strides = [1, 1]} : vector<64x2xf32> to vector<64x1xf32>
    %3 = vector.extract_strided_slice %0 {offsets = [0, 0], sizes = [1, 128], strides = [1, 1]} : vector<2x128xf32> to vector<1x128xf32>
    %4 = vector.broadcast %2 : vector<64x1xf32> to vector<64x128xf32>
    %5 = vector.broadcast %3 : vector<1x128xf32> to vector<64x128xf32>
    %6 = arith.mulf %4, %5 : vector<64x128xf32>
    %7 = vector.extract_strided_slice %1 {offsets = [0, 1], sizes = [64, 1], strides = [1, 1]} : vector<64x2xf32> to vector<64x1xf32>
    %8 = vector.extract_strided_slice %0 {offsets = [1, 0], sizes = [1, 128], strides = [1, 1]} : vector<2x128xf32> to vector<1x128xf32>
    %9 = vector.broadcast %7 : vector<64x1xf32> to vector<64x128xf32>
    %10 = vector.broadcast %8 : vector<1x128xf32> to vector<64x128xf32>
    %11 = arith.mulf %9, %10 : vector<64x128xf32>
    %12 = arith.addf %6, %11 : vector<64x128xf32>
    %c0_3 = arith.constant 0 : index
    %c0_4 = arith.constant 0 : index
    %13 = vector.load %arg3[%c0_3, %c0_4] : memref<64x1xf32, #tpu.memory_space<vmem>>, vector<64x1xf32>
    %14 = vector.broadcast %13 : vector<64x1xf32> to vector<64x128xf32>
    %15 = arith.addf %12, %14 : vector<64x128xf32>
    %cst = arith.constant 0.000000e+00 : f32
    %16 = vector.broadcast %cst : f32 to vector<64x128xf32>
    %17 = arith.maximumf %15, %16 : vector<64x128xf32>
    %c0_5 = arith.constant 0 : index
    %c0_6 = arith.constant 0 : index
    %18 = vector.load %arg4[%c0_5, %c0_6] : memref<64x64xf32, #tpu.memory_space<vmem>>, vector<64x64xf32>
    %cst_7 = arith.constant dense<0.000000e+00> : vector<64x128xf32>
    %19 = tpu.matmul %18, %17, %cst_7 {dimension_numbers = #tpu.dot_dimension_numbers<[1], [0], [0], [1], [0, 0, 1, 1], [], []>} : vector<64x64xf32>, vector<64x128xf32>, vector<64x128xf32> -> vector<64x128xf32>
    %c0_8 = arith.constant 0 : index
    %c0_9 = arith.constant 0 : index
    %20 = vector.load %arg5[%c0_8, %c0_9] : memref<64x1xf32, #tpu.memory_space<vmem>>, vector<64x1xf32>
    %21 = vector.broadcast %20 : vector<64x1xf32> to vector<64x128xf32>
    %22 = arith.addf %19, %21 : vector<64x128xf32>
    %cst_10 = arith.constant 0.000000e+00 : f32
    %23 = vector.broadcast %cst_10 : f32 to vector<64x128xf32>
    %24 = arith.maximumf %22, %23 : vector<64x128xf32>
    %c0_11 = arith.constant 0 : index
    %c0_12 = arith.constant 0 : index
    %25 = vector.load %arg6[%c0_11, %c0_12] : memref<4x64xf32, #tpu.memory_space<vmem>>, vector<4x64xf32>
    %cst_13 = arith.constant dense<0.000000e+00> : vector<4x128xf32>
    %26 = tpu.matmul %25, %24, %cst_13 {dimension_numbers = #tpu.dot_dimension_numbers<[1], [0], [0], [1], [0, 0, 1, 1], [], []>} : vector<4x64xf32>, vector<64x128xf32>, vector<4x128xf32> -> vector<4x128xf32>
    %c0_14 = arith.constant 0 : index
    %c0_15 = arith.constant 0 : index
    %27 = vector.load %arg7[%c0_14, %c0_15] : memref<4x1xf32, #tpu.memory_space<vmem>>, vector<4x1xf32>
    %28 = vector.broadcast %27 : vector<4x1xf32> to vector<4x128xf32>
    %29 = arith.addf %26, %28 : vector<4x128xf32>
    %30 = tpu.iota {dimensions = array<i32: 0>} : vector<4x128xi32>
    %c2_i32 = arith.constant 2 : i32
    %31 = vector.broadcast %c2_i32 : i32 to vector<4x128xi32>
    %32 = arith.cmpi slt, %30, %31 : vector<4x128xi32>
    %cst_16 = arith.constant 5.000000e-01 : f32
    %33 = vector.broadcast %cst_16 : f32 to vector<4x128xf32>
    %34 = arith.mulf %33, %29 : vector<4x128xf32>
    %35 = math.exp %34 : vector<4x128xf32>
    %36 = arith.select %32, %29, %35 : vector<4x128xi1>, vector<4x128xf32>
    %c0_17 = arith.constant 0 : index
    %c0_18 = arith.constant 0 : index
    %37 = vector.load %arg8[%c0_17, %c0_18] : memref<4x128xf32, #tpu.memory_space<vmem>>, vector<4x128xf32>
    tpu.vector_store %arg8[%c0_17, %c0_18], %36 {strides = array<i32>} : memref<4x128xf32, #tpu.memory_space<vmem>>, vector<4x128xf32>,
    return
  }
  func.func @transform_0(%arg0: i32) -> (i32, i32) {
    %c0_i32 = arith.constant 0 : i32
    %c0_i32_0 = arith.constant 0 : i32
    return %c0_i32, %arg0 : i32, i32
  }
  func.func @transform_1(%arg0: i32) -> (i32, i32) {
    %c0_i32 = arith.constant 0 : i32
    %c0_i32_0 = arith.constant 0 : i32
    %c0_i32_1 = arith.constant 0 : i32
    return %c0_i32, %c0_i32_0 : i32, i32
  }
  func.func @transform_2(%arg0: i32) -> (i32, i32) {
    %c0_i32 = arith.constant 0 : i32
    %c0_i32_0 = arith.constant 0 : i32
    %c0_i32_1 = arith.constant 0 : i32
    return %c0_i32, %c0_i32_0 : i32, i32
  }
  func.func @transform_3(%arg0: i32) -> (i32, i32) {
    %c0_i32 = arith.constant 0 : i32
    %c0_i32_0 = arith.constant 0 : i32
    %c0_i32_1 = arith.constant 0 : i32
    return %c0_i32, %c0_i32_0 : i32, i32
  }
  func.func @transform_4(%arg0: i32) -> (i32, i32) {
    %c0_i32 = arith.constant 0 : i32
    %c0_i32_0 = arith.constant 0 : i32
    %c0_i32_1 = arith.constant 0 : i32
    return %c0_i32, %c0_i32_0 : i32, i32
  }
  func.func @transform_5(%arg0: i32) -> (i32, i32) {
    %c0_i32 = arith.constant 0 : i32
    %c0_i32_0 = arith.constant 0 : i32
    %c0_i32_1 = arith.constant 0 : i32
    return %c0_i32, %c0_i32_0 : i32, i32
  }
  func.func @transform_6(%arg0: i32) -> (i32, i32) {
    %c0_i32 = arith.constant 0 : i32
    %c0_i32_0 = arith.constant 0 : i32
    %c0_i32_1 = arith.constant 0 : i32
    return %c0_i32, %c0_i32_0 : i32, i32
  }
  func.func @transform_7(%arg0: i32) -> (i32, i32) {
    %c0_i32 = arith.constant 0 : i32
    %c0_i32_0 = arith.constant 0 : i32
    return %c0_i32, %arg0 : i32, i32
  }
}

</mosaic_0001>

<llo_original>
// kernel: variational_posterior_forward.1
$region0: #{variational_posterior_forward.1}
  #allocation0 [shape = 'u32[]', space=smem, size = 0x4, offset = 0x4, fixed_abs, tag = 'smem constant byte address 0x4 - core index']
  #allocation1 [shape = 'u32[72,128]{1,0:T(1,128)}', space=vmem, size = 0x9000, scoped, tag = 'internal scratch']
  %s0 = inlined_call_operand.vmem [shape: f32[2,128], index: 0, kind: input, shape index: {}]
  %s1 = inlined_call_operand.vmem [shape: f32[64,2], index: 1, kind: input, shape index: {}]
  %s2 = inlined_call_operand.vmem [shape: f32[64,1], index: 2, kind: input, shape index: {}]
  %s3 = inlined_call_operand.vmem [shape: f32[64,64], index: 3, kind: input, shape index: {}]
  %s4 = inlined_call_operand.vmem [shape: f32[64,1], index: 4, kind: input, shape index: {}]
  %s5 = inlined_call_operand.vmem [shape: f32[4,64], index: 5, kind: input, shape index: {}]
  %s6 = inlined_call_operand.vmem [shape: f32[4,1], index: 6, kind: input, shape index: {}]
  %s7 = inlined_call_operand.vmem [shape: f32[4,128], index: 7, kind: output, shape index: {}]
  %s8 = sld [smem:[#allocation0]]
  $region38: #{variational_posterior_forward.1} parent=0
    _
  %s10 = ssub.s32 1, %s8
  %s11 = scalar_select 0, %s10, %s8
  // Predicated region
  $region2: #{variational_posterior_forward.1} parent=0 // pred_check
    _
  $region3: #{variational_posterior_forward.1} parent=0 // pred_check_branch
    %13 = sbr.rel (0) target = $region5
  $region4: #{variational_posterior_forward.1} parent=0 // pred_region
    _
  $region5: #{variational_posterior_forward.1} parent=0 // pred_fallthru
    _
  // Predicated region
  $region6: #{variational_posterior_forward.1} parent=0 // pred_check
    _
  $region7: #{variational_posterior_forward.1} parent=0 // pred_check_branch
    %15 = sbr.rel (0) target = $region9
  $region8: #{variational_posterior_forward.1} parent=0 // pred_region
    _
  $region9: #{variational_posterior_forward.1} parent=0 // pred_fallthru
    _
  // Predicated region
  $region10: #{variational_posterior_forward.1} parent=0 // pred_check
    _
  $region11: #{variational_posterior_forward.1} parent=0 // pred_check_branch
    %17 = sbr.rel (0) target = $region13
  $region12: #{variational_posterior_forward.1} parent=0 // pred_region
    _
  $region13: #{variational_posterior_forward.1} parent=0 // pred_fallthru
    _
  // Predicated region
  $region14: #{variational_posterior_forward.1} parent=0 // pred_check
    _
  $region15: #{variational_posterior_forward.1} parent=0 // pred_check_branch
    %19 = sbr.rel (0) target = $region17
  $region16: #{variational_posterior_forward.1} parent=0 // pred_region
    _
  $region17: #{variational_posterior_forward.1} parent=0 // pred_fallthru
    _
  // Predicated region
  $region18: #{variational_posterior_forward.1} parent=0 // pred_check
    _
  $region19: #{variational_posterior_forward.1} parent=0 // pred_check_branch
    %21 = sbr.rel (0) target = $region21
  $region20: #{variational_posterior_forward.1} parent=0 // pred_region
    _
  $region21: #{variational_posterior_forward.1} parent=0 // pred_fallthru
    _
  // Predicated region
  $region22: #{variational_posterior_forward.1} parent=0 // pred_check
    _
  $region23: #{variational_posterior_forward.1} parent=0 // pred_check_branch
    %23 = sbr.rel (0) target = $region25
  $region24: #{variational_posterior_forward.1} parent=0 // pred_region
    _
  $region25: #{variational_posterior_forward.1} parent=0 // pred_fallthru
    _
  // Predicated region
  $region26: #{variational_posterior_forward.1} parent=0 // pred_check
    _
  $region27: #{variational_posterior_forward.1} parent=0 // pred_check_branch
    %25 = sbr.rel (0) target = $region29
  $region28: #{variational_posterior_forward.1} parent=0 // pred_region
    _
  $region29: #{variational_posterior_forward.1} parent=0 // pred_fallthru
    _
  %v26 = vld [vmem:[%s0] sm:$0x3]
  %v27 = vld [vmem:[%s1] sm:$0xff]
  %v28 = vld [vmem:[%s1 + $0x8] sm:$0xff]
  %v29 = vld [vmem:[%s1 + $0x10] sm:$0xff]
  %v30 = vld [vmem:[%s1 + $0x18] sm:$0xff]
  %v31 = vld [vmem:[%s1 + $0x20] sm:$0xff]
  %v32 = vld [vmem:[%s1 + $0x28] sm:$0xff]
  %v33 = vld [vmem:[%s1 + $0x30] sm:$0xff]
  %v34 = vld [vmem:[%s1 + $0x38] sm:$0xff]
  %36 = vset.pattern.permute.xlu0 0
  %37 = vperm.xlu0 %36, %v27
  %v38 = vpop.permute.xlu0 %37
  %41 = vset.pattern.permute.xlu0 0
  %42 = vperm.xlu0 %41, %v28
  %v43 = vpop.permute.xlu0 %42
  %46 = vset.pattern.permute.xlu0 0
  %47 = vperm.xlu0 %46, %v29
  %v48 = vpop.permute.xlu0 %47
  %51 = vset.pattern.permute.xlu0 0
  %52 = vperm.xlu0 %51, %v30
  %v53 = vpop.permute.xlu0 %52
  %56 = vset.pattern.permute.xlu0 0
  %57 = vperm.xlu0 %56, %v31
  %v58 = vpop.permute.xlu0 %57
  %61 = vset.pattern.permute.xlu0 0
  %62 = vperm.xlu0 %61, %v32
  %v63 = vpop.permute.xlu0 %62
  %66 = vset.pattern.permute.xlu0 0
  %67 = vperm.xlu0 %66, %v33
  %v68 = vpop.permute.xlu0 %67
  %71 = vset.pattern.permute.xlu0 0
  %72 = vperm.xlu0 %71, %v34
  %v73 = vpop.permute.xlu0 %72
  %v75 = vperm.slane %v26, 0
  %v76 = vmul.f32 %v38, %v75
  %v77 = vmul.f32 %v43, %v75
  %v78 = vmul.f32 %v48, %v75
  %v79 = vmul.f32 %v53, %v75
  %v80 = vmul.f32 %v58, %v75
  %v81 = vmul.f32 %v63, %v75
  %v82 = vmul.f32 %v68, %v75
  %v83 = vmul.f32 %v73, %v75
  %84 = vset.pattern.permute.xlu0 1
  %85 = vperm.xlu0 %84, %v27
  %v86 = vpop.permute.xlu0 %85
  %88 = vset.pattern.permute.xlu0 1
  %89 = vperm.xlu0 %88, %v28
  %v90 = vpop.permute.xlu0 %89
  %92 = vset.pattern.permute.xlu0 1
  %93 = vperm.xlu0 %92, %v29
  %v94 = vpop.permute.xlu0 %93
  %96 = vset.pattern.permute.xlu0 1
  %97 = vperm.xlu0 %96, %v30
  %v98 = vpop.permute.xlu0 %97
  %100 = vset.pattern.permute.xlu0 1
  %101 = vperm.xlu0 %100, %v31
  %v102 = vpop.permute.xlu0 %101
  %104 = vset.pattern.permute.xlu0 1
  %105 = vperm.xlu0 %104, %v32
  %v106 = vpop.permute.xlu0 %105
  %108 = vset.pattern.permute.xlu0 1
  %109 = vperm.xlu0 %108, %v33
  %v110 = vpop.permute.xlu0 %109
  %112 = vset.pattern.permute.xlu0 1
  %113 = vperm.xlu0 %112, %v34
  %v114 = vpop.permute.xlu0 %113
  %v116 = vperm.slane %v26, 1
  %v117 = vmul.f32 %v86, %v116
  %v118 = vmul.f32 %v90, %v116
  %v119 = vmul.f32 %v94, %v116
  %v120 = vmul.f32 %v98, %v116
  %v121 = vmul.f32 %v102, %v116
  %v122 = vmul.f32 %v106, %v116
  %v123 = vmul.f32 %v110, %v116
  %v124 = vmul.f32 %v114, %v116
  %v125 = vadd.f32 %v76, %v117
  %v126 = vadd.f32 %v77, %v118
  %v127 = vadd.f32 %v78, %v119
  %v128 = vadd.f32 %v79, %v120
  %v129 = vadd.f32 %v80, %v121
  %v130 = vadd.f32 %v81, %v122
  %v131 = vadd.f32 %v82, %v123
  %v132 = vadd.f32 %v83, %v124
  %v133 = vld [vmem:[%s2] sm:$0xff]
  %v134 = vld [vmem:[%s2 + $0x8] sm:$0xff]
  %v135 = vld [vmem:[%s2 + $0x10] sm:$0xff]
  %v136 = vld [vmem:[%s2 + $0x18] sm:$0xff]
  %v137 = vld [vmem:[%s2 + $0x20] sm:$0xff]
  %v138 = vld [vmem:[%s2 + $0x28] sm:$0xff]
  %v139 = vld [vmem:[%s2 + $0x30] sm:$0xff]
  %v140 = vld [vmem:[%s2 + $0x38] sm:$0xff]
  %142 = vset.pattern.permute.xlu0 0
  %143 = vperm.xlu0 %142, %v133
  %v144 = vpop.permute.xlu0 %143
  %147 = vset.pattern.permute.xlu0 0
  %148 = vperm.xlu0 %147, %v134
  %v149 = vpop.permute.xlu0 %148
  %152 = vset.pattern.permute.xlu0 0
  %153 = vperm.xlu0 %152, %v135
  %v154 = vpop.permute.xlu0 %153
  %157 = vset.pattern.permute.xlu0 0
  %158 = vperm.xlu0 %157, %v136
  %v159 = vpop.permute.xlu0 %158
  %162 = vset.pattern.permute.xlu0 0
  %163 = vperm.xlu0 %162, %v137
  %v164 = vpop.permute.xlu0 %163
  %167 = vset.pattern.permute.xlu0 0
  %168 = vperm.xlu0 %167, %v138
  %v169 = vpop.permute.xlu0 %168
  %172 = vset.pattern.permute.xlu0 0
  %173 = vperm.xlu0 %172, %v139
  %v174 = vpop.permute.xlu0 %173
  %177 = vset.pattern.permute.xlu0 0
  %178 = vperm.xlu0 %177, %v140
  %v179 = vpop.permute.xlu0 %178
  %v181 = vadd.f32 %v125, %v144
  %v182 = vadd.f32 %v126, %v149
  %v183 = vadd.f32 %v127, %v154
  %v184 = vadd.f32 %v128, %v159
  %v185 = vadd.f32 %v129, %v164
  %v186 = vadd.f32 %v130, %v169
  %v187 = vadd.f32 %v131, %v174
  %v188 = vadd.f32 %v132, %v179
  %v189 = vmax.f32 %v181, 0.0
  %v190 = vmax.f32 %v182, 0.0
  %v191 = vmax.f32 %v183, 0.0
  %v192 = vmax.f32 %v184, 0.0
  %v193 = vmax.f32 %v185, 0.0
  %v194 = vmax.f32 %v186, 0.0
  %v195 = vmax.f32 %v187, 0.0
  %v196 = vmax.f32 %v188, 0.0
  %v197 = vld [vmem:[%s3] sm:$0xff]
  %v198 = vld [vmem:[%s3 + $0x8] sm:$0xff]
  %v199 = vld [vmem:[%s3 + $0x10] sm:$0xff]
  %v200 = vld [vmem:[%s3 + $0x18] sm:$0xff]
  %v201 = vld [vmem:[%s3 + $0x20] sm:$0xff]
  %v202 = vld [vmem:[%s3 + $0x28] sm:$0xff]
  %v203 = vld [vmem:[%s3 + $0x30] sm:$0xff]
  %v204 = vld [vmem:[%s3 + $0x38] sm:$0xff]
  %v205 = vld [vmem:[%s4] sm:$0xff]
  %v206 = vld [vmem:[%s4 + $0x8] sm:$0xff]
  %v207 = vld [vmem:[%s4 + $0x10] sm:$0xff]
  %v208 = vld [vmem:[%s4 + $0x18] sm:$0xff]
  %v209 = vld [vmem:[%s4 + $0x20] sm:$0xff]
  %v210 = vld [vmem:[%s4 + $0x28] sm:$0xff]
  %v211 = vld [vmem:[%s4 + $0x30] sm:$0xff]
  %v212 = vld [vmem:[%s4 + $0x38] sm:$0xff]
  %214 = vset.pattern.permute.xlu0 0
  %215 = vperm.xlu0 %214, %v205
  %v216 = vpop.permute.xlu0 %215
  %219 = vset.pattern.permute.xlu0 0
  %220 = vperm.xlu0 %219, %v206
  %v221 = vpop.permute.xlu0 %220
  %224 = vset.pattern.permute.xlu0 0
  %225 = vperm.xlu0 %224, %v207
  %v226 = vpop.permute.xlu0 %225
  %229 = vset.pattern.permute.xlu0 0
  %230 = vperm.xlu0 %229, %v208
  %v231 = vpop.permute.xlu0 %230
  %234 = vset.pattern.permute.xlu0 0
  %235 = vperm.xlu0 %234, %v209
  %v236 = vpop.permute.xlu0 %235
  %239 = vset.pattern.permute.xlu0 0
  %240 = vperm.xlu0 %239, %v210
  %v241 = vpop.permute.xlu0 %240
  %244 = vset.pattern.permute.xlu0 0
  %245 = vperm.xlu0 %244, %v211
  %v246 = vpop.permute.xlu0 %245
  %249 = vset.pattern.permute.xlu0 0
  %250 = vperm.xlu0 %249, %v212
  %v251 = vpop.permute.xlu0 %250
  %vm253 = vcmask 523264
  %v255 = vsel %vm253, %v197, 0
  %v258 = vsel %vm253, %v198, 0
  %v261 = vsel %vm253, %v199, 0
  %v264 = vsel %vm253, %v200, 0
  %v267 = vsel %vm253, %v201, 0
  %v270 = vsel %vm253, %v202, 0
  %v273 = vsel %vm253, %v203, 0
  %v276 = vsel %vm253, %v204, 0
  %278 = vmatpush.msra.mxu0 0.0
  %279 = vmatpush.msra.mxu0 0.0
  %280 = vmatpush.msra.mxu0 0.0
  %281 = vmatpush.msra.mxu0 0.0
  %282 = vmatpush.msra.mxu0 0.0
  %283 = vmatpush.msra.mxu0 0.0
  %284 = vmatpush.msra.mxu0 0.0
  %285 = vmatpush.msra.mxu0 0.0
  %286 = vmatpush.msra.mxu0 %v196
  %287 = vmatpush.msra.mxu0 %v195
  %288 = vmatpush.msra.mxu0 %v194
  %289 = vmatpush.msra.mxu0 %v193
  %290 = vmatpush.msra.mxu0 %v192
  %291 = vmatpush.msra.mxu0 %v191
  %292 = vmatpush.msra.mxu0 %v190
  %293 = vmatpush.msra.mxu0 %v189
  %294 = vmatmul.f32.gmra.mxu0 %v255
  %v295 = vpop.f32.mrf.mxu0
  %v296 = vadd.f32 %v216, %v295
  %297 = vmatmul.f32.gmra.mxu0 %v258
  %v298 = vpop.f32.mrf.mxu0
  %v299 = vadd.f32 %v221, %v298
  %300 = vmatmul.f32.gmra.mxu0 %v261
  %v301 = vpop.f32.mrf.mxu0
  %v302 = vadd.f32 %v226, %v301
  %303 = vmatmul.f32.gmra.mxu0 %v264
  %v304 = vpop.f32.mrf.mxu0
  %v305 = vadd.f32 %v231, %v304
  %306 = vmatmul.f32.gmra.mxu0 %v267
  %v307 = vpop.f32.mrf.mxu0
  %v308 = vadd.f32 %v236, %v307
  %309 = vmatmul.f32.gmra.mxu0 %v270
  %v310 = vpop.f32.mrf.mxu0
  %v311 = vadd.f32 %v241, %v310
  %312 = vmatmul.f32.gmra.mxu0 %v273
  %v313 = vpop.f32.mrf.mxu0
  %v314 = vadd.f32 %v246, %v313
  %315 = vmatmul.f32.gmra.mxu0 %v276
  %v316 = vpop.f32.mrf.mxu0
  %v317 = vadd.f32 %v251, %v316
  %318 = vdwg.mxu0
  %v319 = vmax.f32 %v296, 0.0
  %v320 = vmax.f32 %v299, 0.0
  %v321 = vmax.f32 %v302, 0.0
  %v322 = vmax.f32 %v305, 0.0
  %v323 = vmax.f32 %v308, 0.0
  %v324 = vmax.f32 %v311, 0.0
  %v325 = vmax.f32 %v314, 0.0
  %v326 = vmax.f32 %v317, 0.0
  %v327 = vld [vmem:[%s5] sm:$0xf]
  %v328 = vld [vmem:[%s6] sm:$0xf]
  %330 = vset.pattern.permute.xlu0 0
  %331 = vperm.xlu0 %330, %v328
  %v332 = vpop.permute.xlu0 %331
  %v335 = vsel %vm253, %v327, 0
  %337 = vmatpush.msra.mxu0 0.0
  %338 = vmatpush.msra.mxu0 0.0
  %339 = vmatpush.msra.mxu0 0.0
  %340 = vmatpush.msra.mxu0 0.0
  %341 = vmatpush.msra.mxu0 0.0
  %342 = vmatpush.msra.mxu0 0.0
  %343 = vmatpush.msra.mxu0 0.0
  %344 = vmatpush.msra.mxu0 0.0
  %345 = vmatpush.msra.mxu0 %v326
  %346 = vmatpush.msra.mxu0 %v325
  %347 = vmatpush.msra.mxu0 %v324
  %348 = vmatpush.msra.mxu0 %v323
  %349 = vmatpush.msra.mxu0 %v322
  %350 = vmatpush.msra.mxu0 %v321
  %351 = vmatpush.msra.mxu0 %v320
  %352 = vmatpush.msra.mxu0 %v319
  %353 = vmatmul.f32.gmra.mxu0 %v335
  %v354 = vpop.f32.mrf.mxu0
  %v355 = vadd.f32 %v332, %v354
  %356 = vdwg.mxu0
  %v357 = vlaneseq
  %v358 = vshrl.u32 %v357, 7
  %vm359 = vcmp.lt.s32.totalorder %v358, 2
  %v360 = vmul.f32 %v355, 0.5
  %v361 = vmul.f32 %v360, 1.442695
  %v362 = vpow.pop %v361
  %v363 = vsel %vm359, %v355, %v362
  %364 = vst [vmem:[%s7] sm:$0xf] %v363
  // Predicated region
  $region30: #{variational_posterior_forward.1} parent=0 // pred_check
    _
  $region31: #{variational_posterior_forward.1} parent=0 // pred_check_branch
    %366 = sbr.rel (0) target = $region33
  $region32: #{variational_posterior_forward.1} parent=0 // pred_region
    _
  $region33: #{variational_posterior_forward.1} parent=0 // pred_fallthru
    _
  // Predicated region
  $region34: #{variational_posterior_forward.1} parent=0 // pred_check
    _
  $region35: #{variational_posterior_forward.1} parent=0 // pred_check_branch
    %368 = sbr.rel (0) target = $region37
  $region36: #{variational_posterior_forward.1} parent=0 // pred_region
    _
  $region37: #{variational_posterior_forward.1} parent=0 // pred_fallthru
    _

</llo_original>
